<compile_context>
chip_gen: v5e
topology: v5e:2x2
jax: 0.10.0
libtpu: 0.0.40
codegen_flags: <defaults>
</compile_context>

<pallas_src>
import functools

import jax
import jax.numpy as jnp
from jax import lax
from jax.experimental import pallas as pl
from jax.experimental.pallas import tpu as pltpu

LANE = 128
MASK_VALUE = -1e30                   # finite, so online softmax self-corrects
VMEM_LIMIT = 32 * 1024 * 1024        # safe on v5e/v6e (128 MiB) and v7x (64 MiB)
FUSED_MAX_NODES = 512                # below this, run all 3 layers in one kernel


def _round_up(n, m):
    return ((n + m - 1) // m) * m


def _pad2d(a, rows, cols):
    r, c = a.shape
    return jnp.pad(a, ((0, rows - r), (0, cols - c)))


# ----------------------------------------------------------------------------
# Parameters / graph setup.
# ----------------------------------------------------------------------------
def init_gat_params(key, in_channels, hidden_channels=16, out_channels=2):
    dims = [(in_channels, 256), (256, hidden_channels),
            (hidden_channels, out_channels)]
    params = []
    for fin, fout in dims:
        fin_pad = _round_up(fin, LANE)
        fout_pad = _round_up(fout, LANE)
        key, k_w, k_as, k_ad = jax.random.split(key, 4)
        glorot = jnp.sqrt(2.0 / (fin + fout)).astype(jnp.float32)
        w = glorot * jax.random.normal(k_w, (fin, fout), jnp.float32)
        att_src = glorot * jax.random.normal(k_as, (1, fout), jnp.float32)
        att_dst = glorot * jax.random.normal(k_ad, (1, fout), jnp.float32)
        bias = jnp.zeros((1, fout), jnp.float32)
        params.append((
            _pad2d(w, fin_pad, fout_pad).astype(jnp.bfloat16),   # bf16 weights
            _pad2d(att_src, 1, fout_pad),
            _pad2d(att_dst, 1, fout_pad),
            _pad2d(bias, 1, fout_pad),
        ))
    return params


def build_adj_mask(edge_index, n_pad):
    """int8 mask: 0 on edges src->dst (incl. self-loops on all rows), 1 elsewhere."""
    src, dst = edge_index[0], edge_index[1]
    adj = jnp.zeros((n_pad, n_pad), jnp.bool_)
    adj = adj.at[dst, src].set(True)
    adj = adj | jnp.eye(n_pad, dtype=jnp.bool_)
    return jnp.where(adj, 0, 1).astype(jnp.int8)


def build_tile_tables(mask_i8, tile_dst, tile_src):
    """occ[i,j] = 1 iff (dst tile i, src tile j) has any edge.
       red[i,j] = nearest occupied src tile in row i (DMA-dedup redirect)."""
    n_pad = mask_i8.shape[0]
    n_dst, n_src = n_pad // tile_dst, n_pad // tile_src
    edges = (mask_i8 == 0).reshape(n_dst, tile_dst, n_src, tile_src)
    occ = jnp.any(edges, axis=(1, 3))                            # (n_dst, n_src)
    idx = jnp.arange(n_src, dtype=jnp.int32)[None, :]
    marked = jnp.where(occ, idx, -1)
    last_occ = lax.cummax(marked, axis=1)                        # prev occupied
    first_occ = jnp.argmax(occ, axis=1).astype(jnp.int32)[:, None]
    red = jnp.where(last_occ >= 0, last_occ, first_occ).astype(jnp.int32)
    return occ.astype(jnp.int32).reshape(-1), red.reshape(-1)


# ----------------------------------------------------------------------------
# Path A: fully fused 3-layer kernel for small graphs (single pallas_call).
# ----------------------------------------------------------------------------
def _fused_gat_kernel(x_ref, mask_ref,
                      w1_ref, as1_ref, ad1_ref, b1_ref,
                      w2_ref, as2_ref, ad2_ref, b2_ref,
                      w3_ref, as3_ref, ad3_ref, b3_ref,
                      o_ref):
    mask_bias = mask_ref[...].astype(jnp.float32) * MASK_VALUE       # (N, N)

    def gat_layer(x, w_ref, as_ref, ad_ref, b_ref, act):
        h = jnp.dot(x.astype(jnp.bfloat16), w_ref[...],
                    preferred_element_type=jnp.float32)              # (N, C)
        a_dst = lax.dot_general(h, ad_ref[...],
                                dimension_numbers=(((1,), (1,)), ((), ())),
                                preferred_element_type=jnp.float32)  # (N, 1)
        a_src = lax.dot_general(as_ref[...], h,
                                dimension_numbers=(((1,), (1,)), ((), ())),
                                preferred_element_type=jnp.float32)  # (1, N)
        e = a_dst + a_src
        e = jnp.maximum(e, 0.2 * e)                                  # leaky_relu(0.2)
        e = e + mask_bias
        m = jnp.max(e, axis=-1, keepdims=True)
        p = jnp.exp(e - m)
        l = jnp.maximum(jnp.sum(p, axis=-1, keepdims=True), 1e-20)
        out = jnp.dot(p.astype(jnp.bfloat16), h.astype(jnp.bfloat16),
                      preferred_element_type=jnp.float32)
        out = out * pl.reciprocal(l, approx=True) + b_ref[...]
        if act == "relu":
            return jnp.maximum(out, 0.0)
        return jax.nn.sigmoid(out)

    x = gat_layer(x_ref[...], w1_ref, as1_ref, ad1_ref, b1_ref, "relu")
    # TODO(synk): dropout (training=True) skipped -> identity
    x = gat_layer(x, w2_ref, as2_ref, ad2_ref, b2_ref, "relu")
    x = gat_layer(x, w3_ref, as3_ref, ad3_ref, b3_ref, "sigmoid")
    o_ref[...] = x


def gat_forward_fused(params, x_pad, mask_i8):
    n_pad = x_pad.shape[0]
    c_out = params[2][0].shape[1]
    args = [x_pad, mask_i8]
    for layer in params:
        args.extend(layer)
    return pl.pallas_call(
        _fused_gat_kernel,
        out_shape=jax.ShapeDtypeStruct((n_pad, c_out), jnp.float32),
        compiler_params=pltpu.CompilerParams(vmem_limit_bytes=VMEM_LIMIT),
    )(*args)


# ----------------------------------------------------------------------------
# Path B kernel 1: feature projection + per-node attention logits.
# ----------------------------------------------------------------------------
def _project_kernel(x_ref, w_ref, att_src_ref, att_dst_ref,
                    h_ref, a_src_ref, a_dst_ref):
    h = jnp.dot(x_ref[...].astype(jnp.bfloat16), w_ref[...],
                preferred_element_type=jnp.float32)                  # (tile, C)
    a_dst_ref[...] = lax.dot_general(
        h, att_dst_ref[...], dimension_numbers=(((1,), (1,)), ((), ())),
        preferred_element_type=jnp.float32)                          # (tile, 1)
    a_src_ref[...] = lax.dot_general(
        att_src_ref[...], h, dimension_numbers=(((1,), (1,)), ((), ())),
        preferred_element_type=jnp.float32)                          # (1, tile)
    h_ref[...] = h.astype(h_ref.dtype)                               # bf16


# ----------------------------------------------------------------------------
# Path B kernel 2: masked attention + aggregation, online softmax over
# source tiles, empty tiles skipped via scalar-prefetched occupancy table.
# ----------------------------------------------------------------------------
def _attend_kernel(act, n_src, occ_ref, red_ref,
                   h_src_ref, a_src_ref, a_dst_ref, mask_ref, bias_ref,
                   o_ref, m_scr, l_scr, acc_scr):
    i = pl.program_id(0)
    j = pl.program_id(1)

    @pl.when(j == 0)
    def _init():
        m_scr[...] = jnp.full(m_scr.shape, -jnp.inf, m_scr.dtype)
        l_scr[...] = jnp.zeros(l_scr.shape, l_scr.dtype)
        acc_scr[...] = jnp.zeros(acc_scr.shape, acc_scr.dtype)

    @pl.when(occ_ref[i * n_src + j] != 0)        # skip fully-masked tile pairs
    def _step():
        e = a_dst_ref[...] + a_src_ref[...]                 # (tile_dst, tile_src)
        e = jnp.maximum(e, 0.2 * e)                         # leaky_relu(0.2)
        e = e + mask_ref[...].astype(jnp.float32) * MASK_VALUE
        m_prev = m_scr[...]
        m_new = jnp.maximum(m_prev, jnp.max(e, axis=-1, keepdims=True))
        corr = jnp.exp(m_prev - m_new)
        p = jnp.exp(e - m_new)                              # masked lanes underflow to 0
        l_scr[...] = corr * l_scr[...] + jnp.sum(p, axis=-1, keepdims=True)
        acc_scr[...] = corr * acc_scr[...] + jnp.dot(
            p.astype(jnp.bfloat16), h_src_ref[...],
            preferred_element_type=jnp.float32)
        m_scr[...] = m_new

    @pl.when(j == pl.num_programs(1) - 1)
    def _finalize():
        denom = jnp.maximum(l_scr[...], 1e-20)              # guard 0-degree rows
        out = acc_scr[...] * pl.reciprocal(denom, approx=True) + bias_ref[...]
        if act == "relu":
            out = jnp.maximum(out, 0.0)
        elif act == "sigmoid":
            out = jax.nn.sigmoid(out)
        o_ref[...] = out.astype(o_ref.dtype)


def gat_conv_tiled(x, w, att_src, att_dst, bias, mask_i8, occ_flat, red_flat,
                   act, out_dtype, *, tile_dst, tile_src):
    """One GATConv (heads=1) + fused activation on the tiled path."""
    n_pad, fin = x.shape
    c = w.shape[1]
    n_dst = n_pad // tile_dst
    n_src = n_pad // tile_src

    # ---- projection + per-node logits --------------------------------------
    h, a_src_row, a_dst_col = pl.pallas_call(
        _project_kernel,
        grid=(n_dst,),
        in_specs=[
            pl.BlockSpec((tile_dst, fin), lambda i: (i, 0)),
            pl.BlockSpec((fin, c), lambda i: (0, 0)),
            pl.BlockSpec((1, c), lambda i: (0, 0)),
            pl.BlockSpec((1, c), lambda i: (0, 0)),
        ],
        out_specs=[
            pl.BlockSpec((tile_dst, c), lambda i: (i, 0)),
            pl.BlockSpec((1, tile_dst), lambda i: (0, i)),
            pl.BlockSpec((tile_dst, 1), lambda i: (i, 0)),
        ],
        out_shape=[
            jax.ShapeDtypeStruct((n_pad, c), jnp.bfloat16),
            jax.ShapeDtypeStruct((1, n_pad), jnp.float32),
            jax.ShapeDtypeStruct((n_pad, 1), jnp.float32),
        ],
        compiler_params=pltpu.CompilerParams(
            dimension_semantics=("parallel",),
            vmem_limit_bytes=VMEM_LIMIT),
    )(x, w, att_src, att_dst)

    # ---- masked softmax + aggregation, occupied-tile skipping ---------------
    kernel = functools.partial(_attend_kernel, act, n_src)
    out = pl.pallas_call(
        kernel,
        grid_spec=pltpu.PrefetchScalarGridSpec(
            num_scalar_prefetch=2,                     # occ table, redirect table
            grid=(n_dst, n_src),
            in_specs=[
                # h of source nodes (redirected on empty tiles -> no new DMA)
                pl.BlockSpec((tile_src, c),
                             lambda i, j, occ, red: (red[i * n_src + j], 0)),
                pl.BlockSpec((1, tile_src),
                             lambda i, j, occ, red: (0, red[i * n_src + j])),
                pl.BlockSpec((tile_dst, 1),
                             lambda i, j, occ, red: (i, 0)),
                pl.BlockSpec((tile_dst, tile_src),
                             lambda i, j, occ, red: (i, red[i * n_src + j])),
                pl.BlockSpec((1, c), lambda i, j, occ, red: (0, 0)),
            ],
            out_specs=pl.BlockSpec((tile_dst, c), lambda i, j, occ, red: (i, 0)),
            scratch_shapes=[
                pltpu.VMEM((tile_dst, 1), jnp.float32),   # running max
                pltpu.VMEM((tile_dst, 1), jnp.float32),   # running denom
                pltpu.VMEM((tile_dst, c), jnp.float32),   # f32 accumulator
            ]),
        out_shape=jax.ShapeDtypeStruct((n_pad, c), out_dtype),
        compiler_params=pltpu.CompilerParams(
            dimension_semantics=("parallel", "arbitrary"),
            vmem_limit_bytes=VMEM_LIMIT),
    )(occ_flat, red_flat, h, a_src_row, a_dst_col, mask_i8, bias)
    return out


def gat_forward_tiled(params, x_pad, mask_i8, *, tile_dst, tile_src):
    occ_flat, red_flat = build_tile_tables(mask_i8, tile_dst, tile_src)
    (w1, as1, ad1, b1), (w2, as2, ad2, b2), (w3, as3, ad3, b3) = params
    kw = dict(tile_dst=tile_dst, tile_src=tile_src)
    x = gat_conv_tiled(x_pad, w1, as1, ad1, b1, mask_i8, occ_flat, red_flat,
                       "relu", jnp.bfloat16, **kw)      # bf16 inter-layer act
    # TODO(synk): dropout (training=True) skipped -> identity
    x = gat_conv_tiled(x, w2, as2, ad2, b2, mask_i8, occ_flat, red_flat,
                       "relu", jnp.bfloat16, **kw)
    x = gat_conv_tiled(x, w3, as3, ad3, b3, mask_i8, occ_flat, red_flat,
                       "sigmoid", jnp.float32, **kw)
    return x


def gat_forward(params, x_pad, mask_i8):
    """Dispatch: tiny graphs -> single fused kernel; else tiled path
    (tile_dst=512/tile_src=1024 keeps n_dst>=2 for v7x megacore)."""
    n_pad = x_pad.shape[0]
    if n_pad <= FUSED_MAX_NODES:
        return gat_forward_fused(params, x_pad, mask_i8)
    return gat_forward_tiled(params, x_pad, mask_i8, tile_dst=512, tile_src=1024)


# ----------------------------------------------------------------------------
# Plain-JAX reference (same bf16 rounding points) for correctness checks.
# ----------------------------------------------------------------------------
def gat_forward_ref(params, x_pad, mask_i8):
    mask_bias = mask_i8.astype(jnp.float32) * MASK_VALUE

    def layer(x, w, a_s, a_d, b, act):
        h = jnp.dot(x.astype(jnp.bfloat16), w, preferred_element_type=jnp.float32)
        e = h @ a_d.T + a_s @ h.T
        e = jnp.maximum(e, 0.2 * e) + mask_bias
        p = jax.nn.softmax(e, axis=-1)
        out = jnp.dot(p.astype(jnp.bfloat16), h.astype(jnp.bfloat16),
                      preferred_element_type=jnp.float32) + b
        return jnp.maximum(out, 0.0) if act == "relu" else jax.nn.sigmoid(out)

    x = layer(x_pad, *params[0], "relu")
    x = layer(x, *params[1], "relu")
    x = layer(x, *params[2], "sigmoid")
    return x


# ----------------------------------------------------------------------------
if __name__ == "__main__":
    key = jax.random.PRNGKey(0)
    in_channels, out_channels = 8, 2
    params = init_gat_params(key, in_channels)

    def ring_graph(n):
        idx = jnp.arange(n, dtype=jnp.int32)
        src = jnp.concatenate([idx, (idx + 1) % n])
        dst = jnp.concatenate([(idx + 1) % n, idx])
        return jnp.stack([src, dst])

    # ---- primary: small graph (N=16) -> fused single-kernel path ----------
    num_nodes = 16
    key, k_x = jax.random.split(key)
    x = jax.random.normal(k_x, (num_nodes, in_channels), jnp.float32)
    edge_index = ring_graph(num_nodes)

    n_pad = _round_up(num_nodes, 32)
    x_pad = _pad2d(x, n_pad, _round_up(in_channels, LANE))
    mask_i8 = build_adj_mask(edge_index, n_pad)

    out_pad = gat_forward(params, x_pad, mask_i8)
    out = jax.block_until_ready(out_pad[:num_nodes, :out_channels])
    ref = gat_forward_ref(params, x_pad, mask_i8)[:num_nodes, :out_channels]

    assert out.shape == (num_nodes, out_channels)
    assert bool(jnp.all(jnp.isfinite(out)))
    assert float(jnp.max(jnp.abs(out - ref))) < 1e-1

    # ---- secondary: larger ring graph exercising the tiled / tile-skip path
    n2 = 500
    key, k_x2 = jax.random.split(key)
    x2 = jax.random.normal(k_x2, (n2, in_channels), jnp.float32)
    tile_dst, tile_src = 128, 128
    n2_pad = _round_up(n2, tile_src)
    x2_pad = _pad2d(x2, n2_pad, _round_up(in_channels, LANE))
    mask2 = build_adj_mask(ring_graph(n2), n2_pad)

    out2_pad = gat_forward_tiled(params, x2_pad, mask2,
                                 tile_dst=tile_dst, tile_src=tile_src)
    out2 = jax.block_until_ready(out2_pad[:n2, :out_channels])
    ref2 = gat_forward_ref(params, x2_pad, mask2)[:n2, :out_channels]

    assert bool(jnp.all(jnp.isfinite(out2)))
    assert float(jnp.max(jnp.abs(out2 - ref2))) < 1e-1

    print("KERNEL_OK")
</pallas_src>

<mosaic_0001>
module attributes {stable_mosaic.version = 11 : i64} {
  func.func @_fused_gat_kernel(%arg0: memref<32x128xf32, #tpu.memory_space<vmem>>, %arg1: memref<32x32xi8, #tpu.memory_space<vmem>>, %arg2: memref<128x256xbf16, #tpu.memory_space<vmem>>, %arg3: memref<1x256xf32, #tpu.memory_space<vmem>>, %arg4: memref<1x256xf32, #tpu.memory_space<vmem>>, %arg5: memref<1x256xf32, #tpu.memory_space<vmem>>, %arg6: memref<256x128xbf16, #tpu.memory_space<vmem>>, %arg7: memref<1x128xf32, #tpu.memory_space<vmem>>, %arg8: memref<1x128xf32, #tpu.memory_space<vmem>>, %arg9: memref<1x128xf32, #tpu.memory_space<vmem>>, %arg10: memref<128x128xbf16, #tpu.memory_space<vmem>>, %arg11: memref<1x128xf32, #tpu.memory_space<vmem>>, %arg12: memref<1x128xf32, #tpu.memory_space<vmem>>, %arg13: memref<1x128xf32, #tpu.memory_space<vmem>>, %arg14: memref<32x128xf32, #tpu.memory_space<vmem>>) attributes {dimension_semantics = [], scalar_prefetch = 0 : i64, scratch_operands = 0 : i64, tpu.core_type = #tpu.core_type<tc>} {
    %c0 = arith.constant 0 : index
    %c0_0 = arith.constant 0 : index
    %0 = vector.load %arg1[%c0, %c0_0] : memref<32x32xi8, #tpu.memory_space<vmem>>, vector<32x32xi8>
    %1 = arith.sitofp %0 : vector<32x32xi8> to vector<32x32xf32>
    %cst = arith.constant -1.000000e+30 : f32
    %2 = vector.broadcast %cst : f32 to vector<32x32xf32>
    %3 = arith.mulf %1, %2 : vector<32x32xf32>
    %c0_1 = arith.constant 0 : index
    %c0_2 = arith.constant 0 : index
    %4 = vector.load %arg0[%c0_1, %c0_2] : memref<32x128xf32, #tpu.memory_space<vmem>>, vector<32x128xf32>
    %5 = arith.truncf %4 : vector<32x128xf32> to vector<32x128xbf16>
    %c0_3 = arith.constant 0 : index
    %c0_4 = arith.constant 0 : index
    %6 = vector.load %arg2[%c0_3, %c0_4] : memref<128x256xbf16, #tpu.memory_space<vmem>>, vector<128x256xbf16>
    %cst_5 = arith.constant dense<0.000000e+00> : vector<32x256xf32>
    %7 = tpu.matmul %5, %6, %cst_5 {dimension_numbers = #tpu.dot_dimension_numbers<[1], [0], [0], [1], [0, 0, 1, 1], [], []>} : vector<32x128xbf16>, vector<128x256xbf16>, vector<32x256xf32> -> vector<32x256xf32>
    %c0_6 = arith.constant 0 : index
    %c0_7 = arith.constant 0 : index
    %8 = vector.load %arg4[%c0_6, %c0_7] : memref<1x256xf32, #tpu.memory_space<vmem>>, vector<1x256xf32>
    %cst_8 = arith.constant dense<0.000000e+00> : vector<32x1xf32>
    %9 = tpu.matmul %7, %8, %cst_8 {dimension_numbers = #tpu.dot_dimension_numbers<[1], [1], [0], [0], [0, 0, 1, 0], [], []>} : vector<32x256xf32>, vector<1x256xf32>, vector<32x1xf32> -> vector<32x1xf32>
    %c0_9 = arith.constant 0 : index
    %c0_10 = arith.constant 0 : index
    %10 = vector.load %arg3[%c0_9, %c0_10] : memref<1x256xf32, #tpu.memory_space<vmem>>, vector<1x256xf32>
    %cst_11 = arith.constant dense<0.000000e+00> : vector<1x32xf32>
    %11 = tpu.matmul %10, %7, %cst_11 {dimension_numbers = #tpu.dot_dimension_numbers<[1], [1], [0], [0], [0, 0, 1, 0], [], []>} : vector<1x256xf32>, vector<32x256xf32>, vector<1x32xf32> -> vector<1x32xf32>
    %12 = vector.broadcast %9 : vector<32x1xf32> to vector<32x32xf32>
    %13 = vector.broadcast %11 : vector<1x32xf32> to vector<32x32xf32>
    %14 = arith.addf %12, %13 : vector<32x32xf32>
    %cst_12 = arith.constant 2.000000e-01 : f32
    %15 = vector.broadcast %cst_12 : f32 to vector<32x32xf32>
    %16 = arith.mulf %15, %14 : vector<32x32xf32>
    %17 = arith.maximumf %14, %16 : vector<32x32xf32>
    %18 = arith.addf %17, %3 : vector<32x32xf32>
    %cst_13 = arith.constant dense<0xFF800000> : vector<32xf32>
    %19 = vector.multi_reduction <maximumf>, %18, %cst_13 [1] : vector<32x32xf32> to vector<32xf32>
    %20 = vector.shape_cast %19 : vector<32xf32> to vector<32x1xf32>
    %21 = vector.broadcast %20 : vector<32x1xf32> to vector<32x32xf32>
    %22 = arith.subf %18, %21 : vector<32x32xf32>
    %23 = math.exp %22 : vector<32x32xf32>
    %cst_14 = arith.constant dense<0.000000e+00> : vector<32xf32>
    %24 = vector.multi_reduction <add>, %23, %cst_14 [1] : vector<32x32xf32> to vector<32xf32>
    %25 = vector.shape_cast %24 : vector<32xf32> to vector<32x1xf32>
    %cst_15 = arith.constant 9.99999968E-21 : f32
    %26 = vector.broadcast %cst_15 : f32 to vector<32x1xf32>
    %27 = arith.maximumf %25, %26 : vector<32x1xf32>
    %28 = arith.truncf %23 : vector<32x32xf32> to vector<32x32xbf16>
    %29 = arith.truncf %7 : vector<32x256xf32> to vector<32x256xbf16>
    %cst_16 = arith.constant dense<0.000000e+00> : vector<32x256xf32>
    %30 = tpu.matmul %28, %29, %cst_16 {dimension_numbers = #tpu.dot_dimension_numbers<[1], [0], [0], [1], [0, 0, 1, 1], [], []>} : vector<32x32xbf16>, vector<32x256xbf16>, vector<32x256xf32> -> vector<32x256xf32>
    %31 = tpu.reciprocal %27 {approx = true} : vector<32x1xf32> -> vector<32x1xf32>
    %32 = vector.broadcast %31 : vector<32x1xf32> to vector<32x256xf32>
    %33 = arith.mulf %30, %32 : vector<32x256xf32>
    %c0_17 = arith.constant 0 : index
    %c0_18 = arith.constant 0 : index
    %34 = vector.load %arg5[%c0_17, %c0_18] : memref<1x256xf32, #tpu.memory_space<vmem>>, vector<1x256xf32>
    %35 = vector.broadcast %34 : vector<1x256xf32> to vector<32x256xf32>
    %36 = arith.addf %33, %35 : vector<32x256xf32>
    %cst_19 = arith.constant 0.000000e+00 : f32
    %37 = vector.broadcast %cst_19 : f32 to vector<32x256xf32>
    %38 = arith.maximumf %36, %37 : vector<32x256xf32>
    %39 = arith.truncf %38 : vector<32x256xf32> to vector<32x256xbf16>
    %c0_20 = arith.constant 0 : index
    %c0_21 = arith.constant 0 : index
    %40 = vector.load %arg6[%c0_20, %c0_21] : memref<256x128xbf16, #tpu.memory_space<vmem>>, vector<256x128xbf16>
    %cst_22 = arith.constant dense<0.000000e+00> : vector<32x128xf32>
    %41 = tpu.matmul %39, %40, %cst_22 {dimension_numbers = #tpu.dot_dimension_numbers<[1], [0], [0], [1], [0, 0, 1, 1], [], []>} : vector<32x256xbf16>, vector<256x128xbf16>, vector<32x128xf32> -> vector<32x128xf32>
    %c0_23 = arith.constant 0 : index
    %c0_24 = arith.constant 0 : index
    %42 = vector.load %arg8[%c0_23, %c0_24] : memref<1x128xf32, #tpu.memory_space<vmem>>, vector<1x128xf32>
    %cst_25 = arith.constant dense<0.000000e+00> : vector<32x1xf32>
    %43 = tpu.matmul %41, %42, %cst_25 {dimension_numbers = #tpu.dot_dimension_numbers<[1], [1], [0], [0], [0, 0, 1, 0], [], []>} : vector<32x128xf32>, vector<1x128xf32>, vector<32x1xf32> -> vector<32x1xf32>
    %c0_26 = arith.constant 0 : index
    %c0_27 = arith.constant 0 : index
    %44 = vector.load %arg7[%c0_26, %c0_27] : memref<1x128xf32, #tpu.memory_space<vmem>>, vector<1x128xf32>
    %cst_28 = arith.constant dense<0.000000e+00> : vector<1x32xf32>
    %45 = tpu.matmul %44, %41, %cst_28 {dimension_numbers = #tpu.dot_dimension_numbers<[1], [1], [0], [0], [0, 0, 1, 0], [], []>} : vector<1x128xf32>, vector<32x128xf32>, vector<1x32xf32> -> vector<1x32xf32>
    %46 = vector.broadcast %43 : vector<32x1xf32> to vector<32x32xf32>
    %47 = vector.broadcast %45 : vector<1x32xf32> to vector<32x32xf32>
    %48 = arith.addf %46, %47 : vector<32x32xf32>
    %cst_29 = arith.constant 2.000000e-01 : f32
    %49 = vector.broadcast %cst_29 : f32 to vector<32x32xf32>
    %50 = arith.mulf %49, %48 : vector<32x32xf32>
    %51 = arith.maximumf %48, %50 : vector<32x32xf32>
    %52 = arith.addf %51, %3 : vector<32x32xf32>
    %cst_30 = arith.constant dense<0xFF800000> : vector<32xf32>
    %53 = vector.multi_reduction <maximumf>, %52, %cst_30 [1] : vector<32x32xf32> to vector<32xf32>
    %54 = vector.shape_cast %53 : vector<32xf32> to vector<32x1xf32>
    %55 = vector.broadcast %54 : vector<32x1xf32> to vector<32x32xf32>
    %56 = arith.subf %52, %55 : vector<32x32xf32>
    %57 = math.exp %56 : vector<32x32xf32>
    %cst_31 = arith.constant dense<0.000000e+00> : vector<32xf32>
    %58 = vector.multi_reduction <add>, %57, %cst_31 [1] : vector<32x32xf32> to vector<32xf32>
    %59 = vector.shape_cast %58 : vector<32xf32> to vector<32x1xf32>
    %cst_32 = arith.constant 9.99999968E-21 : f32
    %60 = vector.broadcast %cst_32 : f32 to vector<32x1xf32>
    %61 = arith.maximumf %59, %60 : vector<32x1xf32>
    %62 = arith.truncf %57 : vector<32x32xf32> to vector<32x32xbf16>
    %63 = arith.truncf %41 : vector<32x128xf32> to vector<32x128xbf16>
    %cst_33 = arith.constant dense<0.000000e+00> : vector<32x128xf32>
    %64 = tpu.matmul %62, %63, %cst_33 {dimension_numbers = #tpu.dot_dimension_numbers<[1], [0], [0], [1], [0, 0, 1, 1], [], []>} : vector<32x32xbf16>, vector<32x128xbf16>, vector<32x128xf32> -> vector<32x128xf32>
    %65 = tpu.reciprocal %61 {approx = true} : vector<32x1xf32> -> vector<32x1xf32>
    %66 = vector.broadcast %65 : vector<32x1xf32> to vector<32x128xf32>
    %67 = arith.mulf %64, %66 : vector<32x128xf32>
    %c0_34 = arith.constant 0 : index
    %c0_35 = arith.constant 0 : index
    %68 = vector.load %arg9[%c0_34, %c0_35] : memref<1x128xf32, #tpu.memory_space<vmem>>, vector<1x128xf32>
    %69 = vector.broadcast %68 : vector<1x128xf32> to vector<32x128xf32>
    %70 = arith.addf %67, %69 : vector<32x128xf32>
    %cst_36 = arith.constant 0.000000e+00 : f32
    %71 = vector.broadcast %cst_36 : f32 to vector<32x128xf32>
    %72 = arith.maximumf %70, %71 : vector<32x128xf32>
    %73 = arith.truncf %72 : vector<32x128xf32> to vector<32x128xbf16>
    %c0_37 = arith.constant 0 : index
    %c0_38 = arith.constant 0 : index
    %74 = vector.load %arg10[%c0_37, %c0_38] : memref<128x128xbf16, #tpu.memory_space<vmem>>, vector<128x128xbf16>
    %cst_39 = arith.constant dense<0.000000e+00> : vector<32x128xf32>
    %75 = tpu.matmul %73, %74, %cst_39 {dimension_numbers = #tpu.dot_dimension_numbers<[1], [0], [0], [1], [0, 0, 1, 1], [], []>} : vector<32x128xbf16>, vector<128x128xbf16>, vector<32x128xf32> -> vector<32x128xf32>
    %c0_40 = arith.constant 0 : index
    %c0_41 = arith.constant 0 : index
    %76 = vector.load %arg12[%c0_40, %c0_41] : memref<1x128xf32, #tpu.memory_space<vmem>>, vector<1x128xf32>
    %cst_42 = arith.constant dense<0.000000e+00> : vector<32x1xf32>
    %77 = tpu.matmul %75, %76, %cst_42 {dimension_numbers = #tpu.dot_dimension_numbers<[1], [1], [0], [0], [0, 0, 1, 0], [], []>} : vector<32x128xf32>, vector<1x128xf32>, vector<32x1xf32> -> vector<32x1xf32>
    %c0_43 = arith.constant 0 : index
    %c0_44 = arith.constant 0 : index
    %78 = vector.load %arg11[%c0_43, %c0_44] : memref<1x128xf32, #tpu.memory_space<vmem>>, vector<1x128xf32>
    %cst_45 = arith.constant dense<0.000000e+00> : vector<1x32xf32>
    %79 = tpu.matmul %78, %75, %cst_45 {dimension_numbers = #tpu.dot_dimension_numbers<[1], [1], [0], [0], [0, 0, 1, 0], [], []>} : vector<1x128xf32>, vector<32x128xf32>, vector<1x32xf32> -> vector<1x32xf32>
    %80 = vector.broadcast %77 : vector<32x1xf32> to vector<32x32xf32>
    %81 = vector.broadcast %79 : vector<1x32xf32> to vector<32x32xf32>
    %82 = arith.addf %80, %81 : vector<32x32xf32>
    %cst_46 = arith.constant 2.000000e-01 : f32
    %83 = vector.broadcast %cst_46 : f32 to vector<32x32xf32>
    %84 = arith.mulf %83, %82 : vector<32x32xf32>
    %85 = arith.maximumf %82, %84 : vector<32x32xf32>
    %86 = arith.addf %85, %3 : vector<32x32xf32>
    %cst_47 = arith.constant dense<0xFF800000> : vector<32xf32>
    %87 = vector.multi_reduction <maximumf>, %86, %cst_47 [1] : vector<32x32xf32> to vector<32xf32>
    %88 = vector.shape_cast %87 : vector<32xf32> to vector<32x1xf32>
    %89 = vector.broadcast %88 : vector<32x1xf32> to vector<32x32xf32>
    %90 = arith.subf %86, %89 : vector<32x32xf32>
    %91 = math.exp %90 : vector<32x32xf32>
    %cst_48 = arith.constant dense<0.000000e+00> : vector<32xf32>
    %92 = vector.multi_reduction <add>, %91, %cst_48 [1] : vector<32x32xf32> to vector<32xf32>
    %93 = vector.shape_cast %92 : vector<32xf32> to vector<32x1xf32>
    %cst_49 = arith.constant 9.99999968E-21 : f32
    %94 = vector.broadcast %cst_49 : f32 to vector<32x1xf32>
    %95 = arith.maximumf %93, %94 : vector<32x1xf32>
    %96 = arith.truncf %91 : vector<32x32xf32> to vector<32x32xbf16>
    %97 = arith.truncf %75 : vector<32x128xf32> to vector<32x128xbf16>
    %cst_50 = arith.constant dense<0.000000e+00> : vector<32x128xf32>
    %98 = tpu.matmul %96, %97, %cst_50 {dimension_numbers = #tpu.dot_dimension_numbers<[1], [0], [0], [1], [0, 0, 1, 1], [], []>} : vector<32x32xbf16>, vector<32x128xbf16>, vector<32x128xf32> -> vector<32x128xf32>
    %99 = tpu.reciprocal %95 {approx = true} : vector<32x1xf32> -> vector<32x1xf32>
    %100 = vector.broadcast %99 : vector<32x1xf32> to vector<32x128xf32>
    %101 = arith.mulf %98, %100 : vector<32x128xf32>
    %c0_51 = arith.constant 0 : index
    %c0_52 = arith.constant 0 : index
    %102 = vector.load %arg13[%c0_51, %c0_52] : memref<1x128xf32, #tpu.memory_space<vmem>>, vector<1x128xf32>
    %103 = vector.broadcast %102 : vector<1x128xf32> to vector<32x128xf32>
    %104 = arith.addf %101, %103 : vector<32x128xf32>
    %105 = arith.negf %104 : vector<32x128xf32>
    %106 = math.exp %105 : vector<32x128xf32>
    %cst_53 = arith.constant 1.000000e+00 : f32
    %107 = vector.broadcast %cst_53 : f32 to vector<32x128xf32>
    %108 = arith.addf %107, %106 : vector<32x128xf32>
    %109 = arith.divf %107, %108 : vector<32x128xf32>
    %c0_54 = arith.constant 0 : index
    %c0_55 = arith.constant 0 : index
    %110 = vector.load %arg14[%c0_54, %c0_55] : memref<32x128xf32, #tpu.memory_space<vmem>>, vector<32x128xf32>
    tpu.vector_store %arg14[%c0_54, %c0_55], %109 {strides = array<i32>} : memref<32x128xf32, #tpu.memory_space<vmem>>, vector<32x128xf32>,
    return
  }
}

</mosaic_0001>

<llo_original>
// kernel: tpu_custom_call.1
$region0: #{tpu_custom_call.1}
  #allocation0 [shape = 'u32[]', space=smem, size = 0x4, offset = 0x4, fixed_abs, tag = 'smem constant byte address 0x4 - core index']
  #allocation1 [shape = 'u32[72,128]{1,0:T(1,128)}', space=vmem, size = 0x9000, scoped, tag = 'internal scratch']
  %s0 = inlined_call_operand.hbm [shape: f32[32,128], index: 0, kind: input, shape index: {}]
  %s1 = inlined_call_operand.hbm [shape: s8[32,32], index: 1, kind: input, shape index: {}]
  %s2 = inlined_call_operand.hbm [shape: bf16[128,256], index: 2, kind: input, shape index: {}]
  %s3 = inlined_call_operand.vmem [shape: f32[1,256], index: 3, kind: input, shape index: {}]
  %s4 = inlined_call_operand.hbm [shape: f32[1,256], index: 4, kind: input, shape index: {}]
  %s5 = inlined_call_operand.vmem [shape: f32[1,256], index: 5, kind: input, shape index: {}]
  %s6 = inlined_call_operand.hbm [shape: bf16[256,128], index: 6, kind: input, shape index: {}]
  %s7 = inlined_call_operand.vmem [shape: f32[1,128], index: 7, kind: input, shape index: {}]
  %s8 = inlined_call_operand.vmem [shape: f32[1,128], index: 8, kind: input, shape index: {}]
  %s9 = inlined_call_operand.vmem [shape: f32[1,128], index: 9, kind: input, shape index: {}]
  %s10 = inlined_call_operand.hbm [shape: bf16[128,128], index: 10, kind: input, shape index: {}]
  %s11 = inlined_call_operand.vmem [shape: f32[1,128], index: 11, kind: input, shape index: {}]
  %s12 = inlined_call_operand.vmem [shape: f32[1,128], index: 12, kind: input, shape index: {}]
  %s13 = inlined_call_operand.vmem [shape: f32[1,128], index: 13, kind: input, shape index: {}]
  %s14 = inlined_call_operand.hbm [shape: f32[32,128], index: 14, kind: output, shape index: {}]
  %s15 = sld [smem:[#allocation0]]
  $region90: #{tpu_custom_call.1} parent=0
    _
  %s17 = ssub.s32 1, %s15
  %s18 = scalar_select 0, %s17, %s15
  $region1: #{tpu_custom_call.1} parent=0
    #allocation2 [shape = 'u8[16384]{0}', space=vmem, size = 0x4000, scoped, tag = 'input window, operand 0, single buffered']
    #allocation3 [shape = 's32[1]{0}', space=sflag, size = 0x4, scoped, tag = 'scoped memory for tpu_custom_call.1']
    #allocation4 [shape = 's32[1]{0}', space=sflag, size = 0x4, scoped, tag = 'scoped memory for tpu_custom_call.1']
    #allocation5 [shape = 'u8[4096]{0}', space=vmem, size = 0x1000, scoped, tag = 'input window, operand 1, single buffered']
    #allocation6 [shape = 's32[1]{0}', space=sflag, size = 0x4, scoped, tag = 'scoped memory for tpu_custom_call.1']
    #allocation7 [shape = 'u8[65536]{0}', space=vmem, size = 0x10000, scoped, tag = 'input window, operand 2, single buffered']
    #allocation8 [shape = 'u8[1024]{0}', space=vmem, size = 0x400, scoped, tag = 'input window, operand 4, single buffered']
    #allocation9 [shape = 's32[1]{0}', space=sflag, size = 0x4, scoped, tag = 'scoped memory for tpu_custom_call.1']
    #allocation10 [shape = 'u8[65536]{0}', space=vmem, size = 0x10000, scoped, tag = 'input window, operand 6, single buffered']
    #allocation11 [shape = 'u8[32768]{0}', space=vmem, size = 0x8000, scoped, tag = 'input window, operand 10, single buffered']
    #allocation12 [shape = 's32[1]{0}', space=sflag, size = 0x4, scoped, tag = 'scoped memory for tpu_custom_call.1']
    #allocation13 [shape = 'u8[16384]{0}', space=vmem, size = 0x4000, scoped, tag = 'output window, operand 0, single buffered']
    %19 = vsyncpa [#allocation3], 0
    %20 = vsyncpa [#allocation6], 0
    %21 = vsyncpa [#allocation9], 0
    %22 = vsyncpa [#allocation12], 0
    %23 = vsyncpa [#allocation4], 0
    // Predicated region
    $region2: #{tpu_custom_call.1} parent=1 // pred_check
      _
    $region3: #{tpu_custom_call.1} parent=1 // pred_check_branch
      %25 = sbr.rel (0) target = $region5
    $region4: #{tpu_custom_call.1} parent=1 // pred_region
      %27 = vsyncadd [#allocation3], 0
      %s28 = sshll.u32 %s0, 4
      %s29 = int_to_ptr.hbm [resolvable:$true] %s28
      %s30 = sshll.u32 [#allocation2], 4
      %s31 = int_to_ptr.vmem [resolvable:$true] %s30
      %36 = dma.hbm_to_vmem [thread:$0]  %s29, 512, %s31, [#allocation3], 128, 128, 8
    $region5: #{tpu_custom_call.1} parent=1 // pred_fallthru
      _
    // Predicated region
    $region6: #{tpu_custom_call.1} parent=1 // pred_check
      _
    $region7: #{tpu_custom_call.1} parent=1 // pred_check_branch
      %38 = sbr.rel (0) target = $region9
    $region8: #{tpu_custom_call.1} parent=1 // pred_region
      %40 = vsyncadd [#allocation6], 0
      %s42 = sshll.u32 %s1, 4
      %s43 = int_to_ptr.hbm [resolvable:$true] %s42
      %s44 = sshll.u32 [#allocation5], 4
      %s45 = int_to_ptr.vmem [resolvable:$true] %s44
      %47 = dma.hbm_to_vmem [thread:$0]  %s43, 128, %s45, [#allocation6]
    $region9: #{tpu_custom_call.1} parent=1 // pred_fallthru
      _
    // Predicated region
    $region10: #{tpu_custom_call.1} parent=1 // pred_check
      _
    $region11: #{tpu_custom_call.1} parent=1 // pred_check_branch
      %49 = sbr.rel (0) target = $region13
    $region12: #{tpu_custom_call.1} parent=1 // pred_region
      %51 = vsyncadd [#allocation6], 0
      %s52 = sshll.u32 %s2, 4
      %s53 = int_to_ptr.hbm [resolvable:$true] %s52
      %s54 = sshll.u32 [#allocation7], 4
      %s55 = int_to_ptr.vmem [resolvable:$true] %s54
      %60 = dma.hbm_to_vmem [thread:$0]  %s53, 2048, %s55, [#allocation6], 128, 128, 8
    $region13: #{tpu_custom_call.1} parent=1 // pred_fallthru
      _
    // Predicated region
    $region14: #{tpu_custom_call.1} parent=1 // pred_check
      _
    $region15: #{tpu_custom_call.1} parent=1 // pred_check_branch
      %62 = sbr.rel (0) target = $region17
    $region16: #{tpu_custom_call.1} parent=1 // pred_region
      _
    $region17: #{tpu_custom_call.1} parent=1 // pred_fallthru
      _
    // Predicated region
    $region18: #{tpu_custom_call.1} parent=1 // pred_check
      _
    $region19: #{tpu_custom_call.1} parent=1 // pred_check_branch
      %64 = sbr.rel (0) target = $region21
    $region20: #{tpu_custom_call.1} parent=1 // pred_region
      %66 = vsyncadd [#allocation9], 0
      %s68 = sshll.u32 %s4, 4
      %s69 = int_to_ptr.hbm [resolvable:$true] %s68
      %s70 = sshll.u32 [#allocation8], 4
      %s71 = int_to_ptr.vmem [resolvable:$true] %s70
      %73 = dma.hbm_to_vmem [thread:$0]  %s69, 32, %s71, [#allocation9]
    $region21: #{tpu_custom_call.1} parent=1 // pred_fallthru
      _
    // Predicated region
    $region22: #{tpu_custom_call.1} parent=1 // pred_check
      _
    $region23: #{tpu_custom_call.1} parent=1 // pred_check_branch
      %75 = sbr.rel (0) target = $region25
    $region24: #{tpu_custom_call.1} parent=1 // pred_region
      _
    $region25: #{tpu_custom_call.1} parent=1 // pred_fallthru
      _
    // Predicated region
    $region26: #{tpu_custom_call.1} parent=1 // pred_check
      _
    $region27: #{tpu_custom_call.1} parent=1 // pred_check_branch
      %77 = sbr.rel (0) target = $region29
    $region28: #{tpu_custom_call.1} parent=1 // pred_region
      %79 = vsyncadd [#allocation9], 0
      %s80 = sshll.u32 %s6, 4
      %s81 = int_to_ptr.hbm [resolvable:$true] %s80
      %s82 = sshll.u32 [#allocation10], 4
      %s83 = int_to_ptr.vmem [resolvable:$true] %s82
      %88 = dma.hbm_to_vmem [thread:$0]  %s81, 2048, %s83, [#allocation9], 64, 64, 4
    $region29: #{tpu_custom_call.1} parent=1 // pred_fallthru
      _
    // Predicated region
    $region30: #{tpu_custom_call.1} parent=1 // pred_check
      _
    $region31: #{tpu_custom_call.1} parent=1 // pred_check_branch
      %90 = sbr.rel (0) target = $region33
    $region32: #{tpu_custom_call.1} parent=1 // pred_region
      _
    $region33: #{tpu_custom_call.1} parent=1 // pred_fallthru
      _
    // Predicated region
    $region34: #{tpu_custom_call.1} parent=1 // pred_check
      _
    $region35: #{tpu_custom_call.1} parent=1 // pred_check_branch
      %92 = sbr.rel (0) target = $region37
    $region36: #{tpu_custom_call.1} parent=1 // pred_region
      _
    $region37: #{tpu_custom_call.1} parent=1 // pred_fallthru
      _
    // Predicated region
    $region38: #{tpu_custom_call.1} parent=1 // pred_check
      _
    $region39: #{tpu_custom_call.1} parent=1 // pred_check_branch
      %94 = sbr.rel (0) target = $region41
    $region40: #{tpu_custom_call.1} parent=1 // pred_region
      _
    $region41: #{tpu_custom_call.1} parent=1 // pred_fallthru
      _
    // Predicated region
    $region42: #{tpu_custom_call.1} parent=1 // pred_check
      _
    $region43: #{tpu_custom_call.1} parent=1 // pred_check_branch
      %96 = sbr.rel (0) target = $region45
    $region44: #{tpu_custom_call.1} parent=1 // pred_region
      %98 = vsyncadd [#allocation12], 0
      %s99 = sshll.u32 %s10, 4
      %s100 = int_to_ptr.hbm [resolvable:$true] %s99
      %s101 = sshll.u32 [#allocation11], 4
      %s102 = int_to_ptr.vmem [resolvable:$true] %s101
      %107 = dma.hbm_to_vmem [thread:$0]  %s100, 1024, %s102, [#allocation12], 64, 64, 4
    $region45: #{tpu_custom_call.1} parent=1 // pred_fallthru
      _
    // Predicated region
    $region46: #{tpu_custom_call.1} parent=1 // pred_check
      _
    $region47: #{tpu_custom_call.1} parent=1 // pred_check_branch
      %109 = sbr.rel (0) target = $region49
    $region48: #{tpu_custom_call.1} parent=1 // pred_region
      _
    $region49: #{tpu_custom_call.1} parent=1 // pred_fallthru
      _
    // Predicated region
    $region50: #{tpu_custom_call.1} parent=1 // pred_check
      _
    $region51: #{tpu_custom_call.1} parent=1 // pred_check_branch
      %111 = sbr.rel (0) target = $region53
    $region52: #{tpu_custom_call.1} parent=1 // pred_region
      _
    $region53: #{tpu_custom_call.1} parent=1 // pred_fallthru
      _
    // Predicated region
    $region54: #{tpu_custom_call.1} parent=1 // pred_check
      _
    $region55: #{tpu_custom_call.1} parent=1 // pred_check_branch
      %113 = sbr.rel (0) target = $region57
    $region56: #{tpu_custom_call.1} parent=1 // pred_region
      _
    $region57: #{tpu_custom_call.1} parent=1 // pred_fallthru
      _
    // Predicated region
    $region58: #{tpu_custom_call.1} parent=1 // pred_check
      _
    $region59: #{tpu_custom_call.1} parent=1 // pred_check_branch
      %115 = sbr.rel (0) target = $region61
    $region60: #{tpu_custom_call.1} parent=1 // pred_region
      %117 = dma.done [#allocation3], 512
    $region61: #{tpu_custom_call.1} parent=1 // pred_fallthru
      _
    // Predicated region
    $region62: #{tpu_custom_call.1} parent=1 // pred_check
      _
    $region63: #{tpu_custom_call.1} parent=1 // pred_check_branch
      %119 = sbr.rel (0) target = $region65
    $region64: #{tpu_custom_call.1} parent=1 // pred_region
      %121 = dma.done [#allocation6], 128
    $region65: #{tpu_custom_call.1} parent=1 // pred_fallthru
      _
    // Predicated region
    $region66: #{tpu_custom_call.1} parent=1 // pred_check
      _
    $region67: #{tpu_custom_call.1} parent=1 // pred_check_branch
      %123 = sbr.rel (0) target = $region69
    $region68: #{tpu_custom_call.1} parent=1 // pred_region
      %125 = dma.done [#allocation6], 2048
    $region69: #{tpu_custom_call.1} parent=1 // pred_fallthru
      _
    // Predicated region
    $region70: #{tpu_custom_call.1} parent=1 // pred_check
      _
    $region71: #{tpu_custom_call.1} parent=1 // pred_check_branch
      %127 = sbr.rel (0) target = $region73
    $region72: #{tpu_custom_call.1} parent=1 // pred_region
      %129 = dma.done [#allocation9], 32
    $region73: #{tpu_custom_call.1} parent=1 // pred_fallthru
      _
    // Predicated region
    $region74: #{tpu_custom_call.1} parent=1 // pred_check
      _
    $region75: #{tpu_custom_call.1} parent=1 // pred_check_branch
      %131 = sbr.rel (0) target = $region77
    $region76: #{tpu_custom_call.1} parent=1 // pred_region
      %133 = dma.done [#allocation9], 2048
    $region77: #{tpu_custom_call.1} parent=1 // pred_fallthru
      _
    // Predicated region
    $region78: #{tpu_custom_call.1} parent=1 // pred_check
      _
    $region79: #{tpu_custom_call.1} parent=1 // pred_check_branch
      %135 = sbr.rel (0) target = $region81
    $region80: #{tpu_custom_call.1} parent=1 // pred_region
      %137 = dma.done [#allocation12], 1024
    $region81: #{tpu_custom_call.1} parent=1 // pred_fallthru
      _
    %v139 = vld [vmem:[#allocation5] sm:$0xff]
    %v140 = vunpack.c.0.s8 %v139
    %v141 = vunpack.c.1.s8 %v139
    %v142 = vunpack.c.2.s8 %v139
    %v143 = vunpack.c.3.s8 %v139
    %v144 = vcvt.s32.f32 %v140
    %v145 = vcvt.s32.f32 %v141
    %v146 = vcvt.s32.f32 %v142
    %v147 = vcvt.s32.f32 %v143
    %v148 = vmul.f32 %v144, -1e+30
    %v149 = vmul.f32 %v145, -1e+30
    %v150 = vmul.f32 %v146, -1e+30
    %v151 = vmul.f32 %v147, -1e+30
    %v152 = vld [vmem:[#allocation2] sm:$0xff]
    %v153 = vld [vmem:[#allocation2 + $0x8] sm:$0xff]
    %v154 = vld [vmem:[#allocation2 + $0x10] sm:$0xff]
    %v155 = vld [vmem:[#allocation2 + $0x18] sm:$0xff]
    %v156 = vpack.c.bf16 %v153, %v152
    %v157 = vpack.c.bf16 %v155, %v154
    %v158 = vld [vmem:[#allocation7] sm:$0xff]
    %v159 = vld [vmem:[#allocation7 + $0x8] sm:$0xff]
    %v160 = vld [vmem:[#allocation7 + $0x10] sm:$0xff]
    %v161 = vld [vmem:[#allocation7 + $0x18] sm:$0xff]
    %v162 = vld [vmem:[#allocation7 + $0x20] sm:$0xff]
    %v163 = vld [vmem:[#allocation7 + $0x28] sm:$0xff]
    %v164 = vld [vmem:[#allocation7 + $0x30] sm:$0xff]
    %v165 = vld [vmem:[#allocation7 + $0x38] sm:$0xff]
    %v166 = vld [vmem:[#allocation7 + $0x40] sm:$0xff]
    %v167 = vld [vmem:[#allocation7 + $0x48] sm:$0xff]
    %v168 = vld [vmem:[#allocation7 + $0x50] sm:$0xff]
    %v169 = vld [vmem:[#allocation7 + $0x58] sm:$0xff]
    %v170 = vld [vmem:[#allocation7 + $0x60] sm:$0xff]
    %v171 = vld [vmem:[#allocation7 + $0x68] sm:$0xff]
    %v172 = vld [vmem:[#allocation7 + $0x70] sm:$0xff]
    %v173 = vld [vmem:[#allocation7 + $0x78] sm:$0xff]
    %v190 = vunpack.c.l.b16 %v158
    %v191 = vunpack.c.h.b16 %v158
    %v192 = vunpack.c.l.b16 %v159
    %v193 = vunpack.c.h.b16 %v159
    %v194 = vunpack.c.l.b16 %v160
    %v195 = vunpack.c.h.b16 %v160
    %v196 = vunpack.c.l.b16 %v161
    %v197 = vunpack.c.h.b16 %v161
    %v198 = vunpack.c.l.b16 %v162
    %v199 = vunpack.c.h.b16 %v162
    %v200 = vunpack.c.l.b16 %v163
    %v201 = vunpack.c.h.b16 %v163
    %v202 = vunpack.c.l.b16 %v164
    %v203 = vunpack.c.h.b16 %v164
    %v204 = vunpack.c.l.b16 %v165
    %v205 = vunpack.c.h.b16 %v165
    %v206 = vunpack.c.l.b16 %v166
    %v207 = vunpack.c.h.b16 %v166
    %v208 = vunpack.c.l.b16 %v167
    %v209 = vunpack.c.h.b16 %v167
    %v210 = vunpack.c.l.b16 %v168
    %v211 = vunpack.c.h.b16 %v168
    %v212 = vunpack.c.l.b16 %v169
    %v213 = vunpack.c.h.b16 %v169
    %v214 = vunpack.c.l.b16 %v170
    %v215 = vunpack.c.h.b16 %v170
    %v216 = vunpack.c.l.b16 %v171
    %v217 = vunpack.c.h.b16 %v171
    %v218 = vunpack.c.l.b16 %v172
    %v219 = vunpack.c.h.b16 %v172
    %v220 = vunpack.c.l.b16 %v173
    %v221 = vunpack.c.h.b16 %v173
    %v222 = vpack.c.b16 %v192, %v190
    %v223 = vpack.c.b16 %v193, %v191
    %v224 = vpack.c.b16 %v196, %v194
    %v225 = vpack.c.b16 %v197, %v195
    %v226 = vpack.c.b16 %v200, %v198
    %v227 = vpack.c.b16 %v201, %v199
    %v228 = vpack.c.b16 %v204, %v202
    %v229 = vpack.c.b16 %v205, %v203
    %v230 = vpack.c.b16 %v208, %v206
    %v231 = vpack.c.b16 %v209, %v207
    %v232 = vpack.c.b16 %v212, %v210
    %v233 = vpack.c.b16 %v213, %v211
    %v234 = vpack.c.b16 %v216, %v214
    %v235 = vpack.c.b16 %v217, %v215
    %v236 = vpack.c.b16 %v220, %v218
    %v237 = vpack.c.b16 %v221, %v219
    %254 = vmatpush.bf16.msra.mxu0 %v236
    %255 = vmatpush.bf16.msra.mxu0 %v234
    %256 = vmatpush.bf16.msra.mxu0 %v232
    %257 = vmatpush.bf16.msra.mxu0 %v230
    %258 = vmatpush.bf16.msra.mxu0 %v228
    %259 = vmatpush.bf16.msra.mxu0 %v226
    %260 = vmatpush.bf16.msra.mxu0 %v224
    %261 = vmatpush.bf16.msra.mxu0 %v222
    %262 = vmatmul.bf16.gmra.mxu0 %v156
    %v263 = vpop.f32.mrf.mxu0
    %v264 = vadd.f32 0.0, %v263
    %v265 = vpop.f32.mrf.mxu0
    %v266 = vadd.f32 0.0, %v265
    %267 = vmatmul.bf16.gmra.mxu0 %v157
    %v268 = vpop.f32.mrf.mxu0
    %v269 = vadd.f32 0.0, %v268
    %v270 = vpop.f32.mrf.mxu0
    %v271 = vadd.f32 0.0, %v270
    %272 = vdwg.mxu0
    %273 = vmatpush.bf16.msra.mxu0 %v237
    %274 = vmatpush.bf16.msra.mxu0 %v235
    %275 = vmatpush.bf16.msra.mxu0 %v233
    %276 = vmatpush.bf16.msra.mxu0 %v231
    %277 = vmatpush.bf16.msra.mxu0 %v229
    %278 = vmatpush.bf16.msra.mxu0 %v227
    %279 = vmatpush.bf16.msra.mxu0 %v225
    %280 = vmatpush.bf16.msra.mxu0 %v223
    %281 = vmatmul.bf16.gmra.mxu0 %v156
    %v282 = vpop.f32.mrf.mxu0
    %v283 = vadd.f32 0.0, %v282
    %v284 = vpop.f32.mrf.mxu0
    %v285 = vadd.f32 0.0, %v284
    %286 = vmatmul.bf16.gmra.mxu0 %v157
    %v287 = vpop.f32.mrf.mxu0
    %v288 = vadd.f32 0.0, %v287
    %v289 = vpop.f32.mrf.mxu0
    %v290 = vadd.f32 0.0, %v289
    %291 = vdwg.mxu0
    %v292 = vld [vmem:[#allocation8] sm:$0x3]
    %v294 = vperm.slane %v292, 0
    %v295 = vperm.slane %v292, 1
    %v298 = vmul.f32 %v264, %v294
    %v299 = vmul.f32 %v283, %v295
    %v300 = vmul.f32 %v266, %v294
    %v301 = vmul.f32 %v285, %v295
    %v302 = vmul.f32 %v269, %v294
    %v303 = vmul.f32 %v288, %v295
    %v304 = vmul.f32 %v271, %v294
    %v305 = vmul.f32 %v290, %v295
    %v306 = vadd.f32 %v298, %v299
    %307 = vadd.xlane.f32.xlu0 %v306
    %v308 = vpop.xlane.xlu0 %307
    %v309 = vadd.f32 %v300, %v301
    %310 = vadd.xlane.f32.xlu0 %v309
    %v311 = vpop.xlane.xlu0 %310
    %v312 = vadd.f32 %v302, %v303
    %313 = vadd.xlane.f32.xlu0 %v312
    %v314 = vpop.xlane.xlu0 %313
    %v315 = vadd.f32 %v304, %v305
    %316 = vadd.xlane.f32.xlu0 %v315
    %v317 = vpop.xlane.xlu0 %316
    %v318 = vld [vmem:[%s3] sm:$0x3]
    %v320 = vperm.slane %v318, 0
    %v321 = vperm.slane %v318, 1
    %324 = vmatpush.xpose.msra.mxu0 0.0
    %325 = vmatpush.xpose.msra.mxu0 0.0
    %326 = vmatpush.xpose.msra.mxu0 0.0
    %327 = vmatpush.xpose.msra.mxu0 0.0
    %328 = vmatpush.xpose.msra.mxu0 0.0
    %329 = vmatpush.xpose.msra.mxu0 0.0
    %330 = vmatpush.xpose.msra.mxu0 0.0
    %331 = vmatpush.xpose.msra.mxu0 0.0
    %332 = vmatpush.xpose.msra.mxu0 0.0
    %333 = vmatpush.xpose.msra.mxu0 0.0
    %334 = vmatpush.xpose.msra.mxu0 0.0
    %335 = vmatpush.xpose.msra.mxu0 0.0
    %336 = vmatpush.xpose.msra.mxu0 %v271
    %337 = vmatpush.xpose.msra.mxu0 %v269
    %338 = vmatpush.xpose.msra.mxu0 %v266
    %339 = vmatpush.xpose.msra.mxu0 %v264
    %340 = vmatmul.f32.gmra.mxu0 %v320
    %v341 = vpop.f32.mrf.mxu0
    %v342 = vadd.f32 0.0, %v341
    %343 = vdwg.mxu0
    %344 = vmatpush.xpose.msra.mxu0 0.0
    %345 = vmatpush.xpose.msra.mxu0 0.0
    %346 = vmatpush.xpose.msra.mxu0 0.0
    %347 = vmatpush.xpose.msra.mxu0 0.0
    %348 = vmatpush.xpose.msra.mxu0 0.0
    %349 = vmatpush.xpose.msra.mxu0 0.0
    %350 = vmatpush.xpose.msra.mxu0 0.0
    %351 = vmatpush.xpose.msra.mxu0 0.0
    %352 = vmatpush.xpose.msra.mxu0 0.0
    %353 = vmatpush.xpose.msra.mxu0 0.0
    %354 = vmatpush.xpose.msra.mxu0 0.0
    %355 = vmatpush.xpose.msra.mxu0 0.0
    %356 = vmatpush.xpose.msra.mxu0 %v290
    %357 = vmatpush.xpose.msra.mxu0 %v288
    %358 = vmatpush.xpose.msra.mxu0 %v285
    %359 = vmatpush.xpose.msra.mxu0 %v283
    %360 = vmatmul.f32.gmra.mxu0 %v321
    %v361 = vpop.f32.mrf.mxu0
    %v362 = vadd.f32 %v342, %v361
    %363 = vdwg.mxu0
    %v364 = vperm.slane %v362, 0
    %v365 = vadd.f32 %v308, %v364
    %v366 = vadd.f32 %v311, %v364
    %v367 = vadd.f32 %v314, %v364
    %v368 = vadd.f32 %v317, %v364
    %v369 = vmul.f32 %v365, 0.2
    %v370 = vmul.f32 %v366, 0.2
    %v371 = vmul.f32 %v367, 0.2
    %v372 = vmul.f32 %v368, 0.2
    %v373 = vmax.f32 %v365, %v369
    %v374 = vmax.f32 %v366, %v370
    %v375 = vmax.f32 %v367, %v371
    %v376 = vmax.f32 %v368, %v372
    %v377 = vadd.f32 %v373, %v148
    %v378 = vadd.f32 %v374, %v149
    %v379 = vadd.f32 %v375, %v150
    %v380 = vadd.f32 %v376, %v151
    %vm381 = vcmask 261120
    %v382 = vsel %vm381, %v377, -inf
    %383 = vmax.xlane.f32.xlu0 %v382
    %v384 = vpop.xlane.xlu0 %383
    %v385 = vsel %vm381, %v378, -inf
    %386 = vmax.xlane.f32.xlu0 %v385
    %v387 = vpop.xlane.xlu0 %386
    %v388 = vsel %vm381, %v379, -inf
    %389 = vmax.xlane.f32.xlu0 %v388
    %v390 = vpop.xlane.xlu0 %389
    %v391 = vsel %vm381, %v380, -inf
    %392 = vmax.xlane.f32.xlu0 %v391
    %v393 = vpop.xlane.xlu0 %392
    %v394 = vsub.f32 %v377, %v384
    %v395 = vsub.f32 %v378, %v387
    %v396 = vsub.f32 %v379, %v390
    %v397 = vsub.f32 %v380, %v393
    %v398 = vmul.f32 %v394, 1.442695
    %v399 = vpow.pop %v398
    %v400 = vmul.f32 %v395, 1.442695
    %v401 = vpow.pop %v400
    %v402 = vmul.f32 %v396, 1.442695
    %v403 = vpow.pop %v402
    %v404 = vmul.f32 %v397, 1.442695
    %v405 = vpow.pop %v404
    %v406 = vsel %vm381, %v399, 0.0
    %407 = vadd.xlane.f32.xlu0 %v406
    %v408 = vpop.xlane.xlu0 %407
    %v409 = vsel %vm381, %v401, 0.0
    %410 = vadd.xlane.f32.xlu0 %v409
    %v411 = vpop.xlane.xlu0 %410
    %v412 = vsel %vm381, %v403, 0.0
    %413 = vadd.xlane.f32.xlu0 %v412
    %v414 = vpop.xlane.xlu0 %413
    %v415 = vsel %vm381, %v405, 0.0
    %416 = vadd.xlane.f32.xlu0 %v415
    %v417 = vpop.xlane.xlu0 %416
    %v418 = vmax.f32 %v408, 1e-20
    %v419 = vmax.f32 %v411, 1e-20
    %v420 = vmax.f32 %v414, 1e-20
    %v421 = vmax.f32 %v417, 1e-20
    %v422 = vpack.c.bf16 %v401, %v399
    %v423 = vpack.c.bf16 %v405, %v403
    %v424 = vpack.c.bf16 %v266, %v264
    %v425 = vpack.c.bf16 %v285, %v283
    %v426 = vpack.c.bf16 %v271, %v269
    %v427 = vpack.c.bf16 %v290, %v288
    %v429 = vsel %vm381, %v422, 0
    %v432 = vsel %vm381, %v423, 0
    %434 = vmatpush.bf16.msra.mxu0 0
    %435 = vmatpush.bf16.msra.mxu0 0
    %436 = vmatpush.bf16.msra.mxu0 0
    %437 = vmatpush.bf16.msra.mxu0 0
    %438 = vmatpush.bf16.msra.mxu0 0
    %439 = vmatpush.bf16.msra.mxu0 0
    %440 = vmatpush.bf16.msra.mxu0 %v426
    %441 = vmatpush.bf16.msra.mxu0 %v424
    %442 = vmatmul.bf16.gmra.mxu0 %v429
    %v443 = vpop.f32.mrf.mxu0
    %v444 = vadd.f32 0.0, %v443
    %v445 = vpop.f32.mrf.mxu0
    %v446 = vadd.f32 0.0, %v445
    %447 = vmatmul.bf16.gmra.mxu0 %v432
    %v448 = vpop.f32.mrf.mxu0
    %v449 = vadd.f32 0.0, %v448
    %v450 = vpop.f32.mrf.mxu0
    %v451 = vadd.f32 0.0, %v450
    %452 = vdwg.mxu0
    %453 = vmatpush.bf16.msra.mxu0 0
    %454 = vmatpush.bf16.msra.mxu0 0
    %455 = vmatpush.bf16.msra.mxu0 0
    %456 = vmatpush.bf16.msra.mxu0 0
    %457 = vmatpush.bf16.msra.mxu0 0
    %458 = vmatpush.bf16.msra.mxu0 0
    %459 = vmatpush.bf16.msra.mxu0 %v427
    %460 = vmatpush.bf16.msra.mxu0 %v425
    %461 = vmatmul.bf16.gmra.mxu0 %v429
    %v462 = vpop.f32.mrf.mxu0
    %v463 = vadd.f32 0.0, %v462
    %v464 = vpop.f32.mrf.mxu0
    %v465 = vadd.f32 0.0, %v464
    %466 = vmatmul.bf16.gmra.mxu0 %v432
    %v467 = vpop.f32.mrf.mxu0
    %v468 = vadd.f32 0.0, %v467
    %v469 = vpop.f32.mrf.mxu0
    %v470 = vadd.f32 0.0, %v469
    %471 = vdwg.mxu0
    %v472 = vrcp.pop %v418
    %v473 = vrcp.pop %v419
    %v474 = vrcp.pop %v420
    %v475 = vrcp.pop %v421
    %v476 = vmul.f32 %v444, %v472
    %v477 = vmul.f32 %v463, %v472
    %v478 = vmul.f32 %v446, %v473
    %v479 = vmul.f32 %v465, %v473
    %v480 = vmul.f32 %v449, %v474
    %v481 = vmul.f32 %v468, %v474
    %v482 = vmul.f32 %v451, %v475
    %v483 = vmul.f32 %v470, %v475
    %v484 = vld [vmem:[%s5] sm:$0x3]
    %v486 = vperm.slane %v484, 0
    %v487 = vperm.slane %v484, 1
    %v490 = vadd.f32 %v476, %v486
    %v491 = vadd.f32 %v477, %v487
    %v492 = vadd.f32 %v478, %v486
    %v493 = vadd.f32 %v479, %v487
    %v494 = vadd.f32 %v480, %v486
    %v495 = vadd.f32 %v481, %v487
    %v496 = vadd.f32 %v482, %v486
    %v497 = vadd.f32 %v483, %v487
    %v498 = vmax.f32 %v490, 0.0
    %v499 = vmax.f32 %v491, 0.0
    %v500 = vmax.f32 %v492, 0.0
    %v501 = vmax.f32 %v493, 0.0
    %v502 = vmax.f32 %v494, 0.0
    %v503 = vmax.f32 %v495, 0.0
    %v504 = vmax.f32 %v496, 0.0
    %v505 = vmax.f32 %v497, 0.0
    %v506 = vpack.c.bf16 %v500, %v498
    %v507 = vpack.c.bf16 %v501, %v499
    %v508 = vpack.c.bf16 %v504, %v502
    %v509 = vpack.c.bf16 %v505, %v503
    %v510 = vld [vmem:[#allocation10] sm:$0xf]
    %v511 = vld [vmem:[#allocation10 + $0x4] sm:$0xf]
    %v512 = vld [vmem:[#allocation10 + $0x8] sm:$0xf]
    %v513 = vld [vmem:[#allocation10 + $0xc] sm:$0xf]
    %v514 = vld [vmem:[#allocation10 + $0x10] sm:$0xf]
    %v515 = vld [vmem:[#allocation10 + $0x14] sm:$0xf]
    %v516 = vld [vmem:[#allocation10 + $0x18] sm:$0xf]
    %v517 = vld [vmem:[#allocation10 + $0x1c] sm:$0xf]
    %v518 = vld [vmem:[#allocation10 + $0x20] sm:$0xf]
    %v519 = vld [vmem:[#allocation10 + $0x24] sm:$0xf]
    %v520 = vld [vmem:[#allocation10 + $0x28] sm:$0xf]
    %v521 = vld [vmem:[#allocation10 + $0x2c] sm:$0xf]
    %v522 = vld [vmem:[#allocation10 + $0x30] sm:$0xf]
    %v523 = vld [vmem:[#allocation10 + $0x34] sm:$0xf]
    %v524 = vld [vmem:[#allocation10 + $0x38] sm:$0xf]
    %v525 = vld [vmem:[#allocation10 + $0x3c] sm:$0xf]
    %v526 = vld [vmem:[#allocation10 + $0x40] sm:$0xf]
    %v527 = vld [vmem:[#allocation10 + $0x44] sm:$0xf]
    %v528 = vld [vmem:[#allocation10 + $0x48] sm:$0xf]
    %v529 = vld [vmem:[#allocation10 + $0x4c] sm:$0xf]
    %v530 = vld [vmem:[#allocation10 + $0x50] sm:$0xf]
    %v531 = vld [vmem:[#allocation10 + $0x54] sm:$0xf]
    %v532 = vld [vmem:[#allocation10 + $0x58] sm:$0xf]
    %v533 = vld [vmem:[#allocation10 + $0x5c] sm:$0xf]
    %v534 = vld [vmem:[#allocation10 + $0x60] sm:$0xf]
    %v535 = vld [vmem:[#allocation10 + $0x64] sm:$0xf]
    %v536 = vld [vmem:[#allocation10 + $0x68] sm:$0xf]
    %v537 = vld [vmem:[#allocation10 + $0x6c] sm:$0xf]
    %v538 = vld [vmem:[#allocation10 + $0x70] sm:$0xf]
    %v539 = vld [vmem:[#allocation10 + $0x74] sm:$0xf]
    %v540 = vld [vmem:[#allocation10 + $0x78] sm:$0xf]
    %v541 = vld [vmem:[#allocation10 + $0x7c] sm:$0xf]
    %v574 = vunpack.c.l.b16 %v510
    %v575 = vunpack.c.l.b16 %v511
    %v576 = vunpack.c.l.b16 %v512
    %v577 = vunpack.c.l.b16 %v513
    %v578 = vunpack.c.l.b16 %v514
    %v579 = vunpack.c.l.b16 %v515
    %v580 = vunpack.c.l.b16 %v516
    %v581 = vunpack.c.l.b16 %v517
    %v582 = vunpack.c.l.b16 %v518
    %v583 = vunpack.c.l.b16 %v519
    %v584 = vunpack.c.l.b16 %v520
    %v585 = vunpack.c.l.b16 %v521
    %v586 = vunpack.c.l.b16 %v522
    %v587 = vunpack.c.l.b16 %v523
    %v588 = vunpack.c.l.b16 %v524
    %v589 = vunpack.c.l.b16 %v525
    %v590 = vunpack.c.l.b16 %v526
    %v591 = vunpack.c.l.b16 %v527
    %v592 = vunpack.c.l.b16 %v528
    %v593 = vunpack.c.l.b16 %v529
    %v594 = vunpack.c.l.b16 %v530
    %v595 = vunpack.c.l.b16 %v531
    %v596 = vunpack.c.l.b16 %v532
    %v597 = vunpack.c.l.b16 %v533
    %v598 = vunpack.c.l.b16 %v534
    %v599 = vunpack.c.l.b16 %v535
    %v600 = vunpack.c.l.b16 %v536
    %v601 = vunpack.c.l.b16 %v537
    %v602 = vunpack.c.l.b16 %v538
    %v603 = vunpack.c.l.b16 %v539
    %v604 = vunpack.c.l.b16 %v540
    %v605 = vunpack.c.l.b16 %v541
    %v606 = vpack.c.b16 %v575, %v574
    %v607 = vpack.c.b16 %v577, %v576
    %v608 = vpack.c.b16 %v579, %v578
    %v609 = vpack.c.b16 %v581, %v580
    %v610 = vpack.c.b16 %v583, %v582
    %v611 = vpack.c.b16 %v585, %v584
    %v612 = vpack.c.b16 %v587, %v586
    %v613 = vpack.c.b16 %v589, %v588
    %v614 = vpack.c.b16 %v591, %v590
    %v615 = vpack.c.b16 %v593, %v592
    %v616 = vpack.c.b16 %v595, %v594
    %v617 = vpack.c.b16 %v597, %v596
    %v618 = vpack.c.b16 %v599, %v598
    %v619 = vpack.c.b16 %v601, %v600
    %v620 = vpack.c.b16 %v603, %v602
    %v621 = vpack.c.b16 %v605, %v604
    %638 = vmatpush.bf16.msra.mxu0 %v613
    %639 = vmatpush.bf16.msra.mxu0 %v612
    %640 = vmatpush.bf16.msra.mxu0 %v611
    %641 = vmatpush.bf16.msra.mxu0 %v610
    %642 = vmatpush.bf16.msra.mxu0 %v609
    %643 = vmatpush.bf16.msra.mxu0 %v608
    %644 = vmatpush.bf16.msra.mxu0 %v607
    %645 = vmatpush.bf16.msra.mxu0 %v606
    %646 = vmatmul.bf16.gmra.mxu0 %v506
    %v647 = vpop.f32.mrf.mxu0
    %v648 = vadd.f32 0.0, %v647
    %v649 = vpop.f32.mrf.mxu0
    %v650 = vadd.f32 0.0, %v649
    %651 = vmatmul.bf16.gmra.mxu0 %v508
    %v652 = vpop.f32.mrf.mxu0
    %v653 = vadd.f32 0.0, %v652
    %v654 = vpop.f32.mrf.mxu0
    %v655 = vadd.f32 0.0, %v654
    %656 = vdwg.mxu0
    %657 = vmatpush.bf16.msra.mxu0 %v621
    %658 = vmatpush.bf16.msra.mxu0 %v620
    %659 = vmatpush.bf16.msra.mxu0 %v619
    %660 = vmatpush.bf16.msra.mxu0 %v618
    %661 = vmatpush.bf16.msra.mxu0 %v617
    %662 = vmatpush.bf16.msra.mxu0 %v616
    %663 = vmatpush.bf16.msra.mxu0 %v615
    %664 = vmatpush.bf16.msra.mxu0 %v614
    %665 = vmatmul.bf16.gmra.mxu0 %v507
    %v666 = vpop.f32.mrf.mxu0
    %v667 = vadd.f32 %v648, %v666
    %v668 = vpop.f32.mrf.mxu0
    %v669 = vadd.f32 %v650, %v668
    %670 = vmatmul.bf16.gmra.mxu0 %v509
    %v671 = vpop.f32.mrf.mxu0
    %v672 = vadd.f32 %v653, %v671
    %v673 = vpop.f32.mrf.mxu0
    %v674 = vadd.f32 %v655, %v673
    %675 = vdwg.mxu0
    %v676 = vld [vmem:[%s8] sm:$0x1]
    %v678 = vperm.slane %v676, 0
    %v680 = vmul.f32 %v667, %v678
    %v681 = vmul.f32 %v669, %v678
    %v682 = vmul.f32 %v672, %v678
    %v683 = vmul.f32 %v674, %v678
    %684 = vadd.xlane.f32.xlu0 %v680
    %v685 = vpop.xlane.xlu0 %684
    %686 = vadd.xlane.f32.xlu0 %v681
    %v687 = vpop.xlane.xlu0 %686
    %688 = vadd.xlane.f32.xlu0 %v682
    %v689 = vpop.xlane.xlu0 %688
    %690 = vadd.xlane.f32.xlu0 %v683
    %v691 = vpop.xlane.xlu0 %690
    %v692 = vld [vmem:[%s7] sm:$0x1]
    %693 = vmatpush.xpose.msra.mxu0 0.0
    %694 = vmatpush.xpose.msra.mxu0 0.0
    %695 = vmatpush.xpose.msra.mxu0 0.0
    %696 = vmatpush.xpose.msra.mxu0 0.0
    %697 = vmatpush.xpose.msra.mxu0 0.0
    %698 = vmatpush.xpose.msra.mxu0 0.0
    %699 = vmatpush.xpose.msra.mxu0 0.0
    %700 = vmatpush.xpose.msra.mxu0 0.0
    %701 = vmatpush.xpose.msra.mxu0 0.0
    %702 = vmatpush.xpose.msra.mxu0 0.0
    %703 = vmatpush.xpose.msra.mxu0 0.0
    %704 = vmatpush.xpose.msra.mxu0 0.0
    %705 = vmatpush.xpose.msra.mxu0 %v674
    %706 = vmatpush.xpose.msra.mxu0 %v672
    %707 = vmatpush.xpose.msra.mxu0 %v669
    %708 = vmatpush.xpose.msra.mxu0 %v667
    %709 = vmatmul.f32.gmra.mxu0 %v692
    %v710 = vpop.f32.mrf.mxu0
    %v711 = vadd.f32 0.0, %v710
    %712 = vdwg.mxu0
    %v713 = vperm.slane %v711, 0
    %v714 = vadd.f32 %v685, %v713
    %v715 = vadd.f32 %v687, %v713
    %v716 = vadd.f32 %v689, %v713
    %v717 = vadd.f32 %v691, %v713
    %v718 = vmul.f32 %v714, 0.2
    %v719 = vmul.f32 %v715, 0.2
    %v720 = vmul.f32 %v716, 0.2
    %v721 = vmul.f32 %v717, 0.2
    %v722 = vmax.f32 %v714, %v718
    %v723 = vmax.f32 %v715, %v719
    %v724 = vmax.f32 %v716, %v720
    %v725 = vmax.f32 %v717, %v721
    %v726 = vadd.f32 %v722, %v148
    %v727 = vadd.f32 %v723, %v149
    %v728 = vadd.f32 %v724, %v150
    %v729 = vadd.f32 %v725, %v151
    %v730 = vsel %vm381, %v726, -inf
    %731 = vmax.xlane.f32.xlu0 %v730
    %v732 = vpop.xlane.xlu0 %731
    %v733 = vsel %vm381, %v727, -inf
    %734 = vmax.xlane.f32.xlu0 %v733
    %v735 = vpop.xlane.xlu0 %734
    %v736 = vsel %vm381, %v728, -inf
    %737 = vmax.xlane.f32.xlu0 %v736
    %v738 = vpop.xlane.xlu0 %737
    %v739 = vsel %vm381, %v729, -inf
    %740 = vmax.xlane.f32.xlu0 %v739
    %v741 = vpop.xlane.xlu0 %740
    %v742 = vsub.f32 %v726, %v732
    %v743 = vsub.f32 %v727, %v735
    %v744 = vsub.f32 %v728, %v738
    %v745 = vsub.f32 %v729, %v741
    %v746 = vmul.f32 %v742, 1.442695
    %v747 = vpow.pop %v746
    %v748 = vmul.f32 %v743, 1.442695
    %v749 = vpow.pop %v748
    %v750 = vmul.f32 %v744, 1.442695
    %v751 = vpow.pop %v750
    %v752 = vmul.f32 %v745, 1.442695
    %v753 = vpow.pop %v752
    %v754 = vsel %vm381, %v747, 0.0
    %755 = vadd.xlane.f32.xlu0 %v754
    %v756 = vpop.xlane.xlu0 %755
    %v757 = vsel %vm381, %v749, 0.0
    %758 = vadd.xlane.f32.xlu0 %v757
    %v759 = vpop.xlane.xlu0 %758
    %v760 = vsel %vm381, %v751, 0.0
    %761 = vadd.xlane.f32.xlu0 %v760
    %v762 = vpop.xlane.xlu0 %761
    %v763 = vsel %vm381, %v753, 0.0
    %764 = vadd.xlane.f32.xlu0 %v763
    %v765 = vpop.xlane.xlu0 %764
    %v766 = vmax.f32 %v756, 1e-20
    %v767 = vmax.f32 %v759, 1e-20
    %v768 = vmax.f32 %v762, 1e-20
    %v769 = vmax.f32 %v765, 1e-20
    %v770 = vpack.c.bf16 %v749, %v747
    %v771 = vpack.c.bf16 %v753, %v751
    %v772 = vpack.c.bf16 %v669, %v667
    %v773 = vpack.c.bf16 %v674, %v672
    %v775 = vsel %vm381, %v770, 0
    %v778 = vsel %vm381, %v771, 0
    %780 = vmatpush.bf16.msra.mxu0 0
    %781 = vmatpush.bf16.msra.mxu0 0
    %782 = vmatpush.bf16.msra.mxu0 0
    %783 = vmatpush.bf16.msra.mxu0 0
    %784 = vmatpush.bf16.msra.mxu0 0
    %785 = vmatpush.bf16.msra.mxu0 0
    %786 = vmatpush.bf16.msra.mxu0 %v773
    %787 = vmatpush.bf16.msra.mxu0 %v772
    %788 = vmatmul.bf16.gmra.mxu0 %v775
    %v789 = vpop.f32.mrf.mxu0
    %v790 = vadd.f32 0.0, %v789
    %v791 = vpop.f32.mrf.mxu0
    %v792 = vadd.f32 0.0, %v791
    %793 = vmatmul.bf16.gmra.mxu0 %v778
    %v794 = vpop.f32.mrf.mxu0
    %v795 = vadd.f32 0.0, %v794
    %v796 = vpop.f32.mrf.mxu0
    %v797 = vadd.f32 0.0, %v796
    %798 = vdwg.mxu0
    %v799 = vrcp.pop %v766
    %v800 = vrcp.pop %v767
    %v801 = vrcp.pop %v768
    %v802 = vrcp.pop %v769
    %v803 = vmul.f32 %v790, %v799
    %v804 = vmul.f32 %v792, %v800
    %v805 = vmul.f32 %v795, %v801
    %v806 = vmul.f32 %v797, %v802
    %v807 = vld [vmem:[%s9] sm:$0x1]
    %v809 = vperm.slane %v807, 0
    %v811 = vadd.f32 %v803, %v809
    %v812 = vadd.f32 %v804, %v809
    %v813 = vadd.f32 %v805, %v809
    %v814 = vadd.f32 %v806, %v809
    %v815 = vmax.f32 %v811, 0.0
    %v816 = vmax.f32 %v812, 0.0
    %v817 = vmax.f32 %v813, 0.0
    %v818 = vmax.f32 %v814, 0.0
    %v819 = vpack.c.bf16 %v816, %v815
    %v820 = vpack.c.bf16 %v818, %v817
    %v821 = vld [vmem:[#allocation11] sm:$0xf]
    %v822 = vld [vmem:[#allocation11 + $0x4] sm:$0xf]
    %v823 = vld [vmem:[#allocation11 + $0x8] sm:$0xf]
    %v824 = vld [vmem:[#allocation11 + $0xc] sm:$0xf]
    %v825 = vld [vmem:[#allocation11 + $0x10] sm:$0xf]
    %v826 = vld [vmem:[#allocation11 + $0x14] sm:$0xf]
    %v827 = vld [vmem:[#allocation11 + $0x18] sm:$0xf]
    %v828 = vld [vmem:[#allocation11 + $0x1c] sm:$0xf]
    %v829 = vld [vmem:[#allocation11 + $0x20] sm:$0xf]
    %v830 = vld [vmem:[#allocation11 + $0x24] sm:$0xf]
    %v831 = vld [vmem:[#allocation11 + $0x28] sm:$0xf]
    %v832 = vld [vmem:[#allocation11 + $0x2c] sm:$0xf]
    %v833 = vld [vmem:[#allocation11 + $0x30] sm:$0xf]
    %v834 = vld [vmem:[#allocation11 + $0x34] sm:$0xf]
    %v835 = vld [vmem:[#allocation11 + $0x38] sm:$0xf]
    %v836 = vld [vmem:[#allocation11 + $0x3c] sm:$0xf]
    %v853 = vunpack.c.l.b16 %v821
    %v854 = vunpack.c.l.b16 %v822
    %v855 = vunpack.c.l.b16 %v823
    %v856 = vunpack.c.l.b16 %v824
    %v857 = vunpack.c.l.b16 %v825
    %v858 = vunpack.c.l.b16 %v826
    %v859 = vunpack.c.l.b16 %v827
    %v860 = vunpack.c.l.b16 %v828
    %v861 = vunpack.c.l.b16 %v829
    %v862 = vunpack.c.l.b16 %v830
    %v863 = vunpack.c.l.b16 %v831
    %v864 = vunpack.c.l.b16 %v832
    %v865 = vunpack.c.l.b16 %v833
    %v866 = vunpack.c.l.b16 %v834
    %v867 = vunpack.c.l.b16 %v835
    %v868 = vunpack.c.l.b16 %v836
    %v869 = vpack.c.b16 %v854, %v853
    %v870 = vpack.c.b16 %v856, %v855
    %v871 = vpack.c.b16 %v858, %v857
    %v872 = vpack.c.b16 %v860, %v859
    %v873 = vpack.c.b16 %v862, %v861
    %v874 = vpack.c.b16 %v864, %v863
    %v875 = vpack.c.b16 %v866, %v865
    %v876 = vpack.c.b16 %v868, %v867
    %885 = vmatpush.bf16.msra.mxu0 %v876
    %886 = vmatpush.bf16.msra.mxu0 %v875
    %887 = vmatpush.bf16.msra.mxu0 %v874
    %888 = vmatpush.bf16.msra.mxu0 %v873
    %889 = vmatpush.bf16.msra.mxu0 %v872
    %890 = vmatpush.bf16.msra.mxu0 %v871
    %891 = vmatpush.bf16.msra.mxu0 %v870
    %892 = vmatpush.bf16.msra.mxu0 %v869
    %893 = vmatmul.bf16.gmra.mxu0 %v819
    %v894 = vpop.f32.mrf.mxu0
    %v895 = vadd.f32 0.0, %v894
    %v896 = vpop.f32.mrf.mxu0
    %v897 = vadd.f32 0.0, %v896
    %898 = vmatmul.bf16.gmra.mxu0 %v820
    %v899 = vpop.f32.mrf.mxu0
    %v900 = vadd.f32 0.0, %v899
    %v901 = vpop.f32.mrf.mxu0
    %v902 = vadd.f32 0.0, %v901
    %903 = vdwg.mxu0
    %v904 = vld [vmem:[%s12] sm:$0x1]
    %v906 = vperm.slane %v904, 0
    %v908 = vmul.f32 %v895, %v906
    %v909 = vmul.f32 %v897, %v906
    %v910 = vmul.f32 %v900, %v906
    %v911 = vmul.f32 %v902, %v906
    %912 = vadd.xlane.f32.xlu0 %v908
    %v913 = vpop.xlane.xlu0 %912
    %914 = vadd.xlane.f32.xlu0 %v909
    %v915 = vpop.xlane.xlu0 %914
    %916 = vadd.xlane.f32.xlu0 %v910
    %v917 = vpop.xlane.xlu0 %916
    %918 = vadd.xlane.f32.xlu0 %v911
    %v919 = vpop.xlane.xlu0 %918
    %v920 = vld [vmem:[%s11] sm:$0x1]
    %921 = vmatpush.xpose.msra.mxu0 0.0
    %922 = vmatpush.xpose.msra.mxu0 0.0
    %923 = vmatpush.xpose.msra.mxu0 0.0
    %924 = vmatpush.xpose.msra.mxu0 0.0
    %925 = vmatpush.xpose.msra.mxu0 0.0
    %926 = vmatpush.xpose.msra.mxu0 0.0
    %927 = vmatpush.xpose.msra.mxu0 0.0
    %928 = vmatpush.xpose.msra.mxu0 0.0
    %929 = vmatpush.xpose.msra.mxu0 0.0
    %930 = vmatpush.xpose.msra.mxu0 0.0
    %931 = vmatpush.xpose.msra.mxu0 0.0
    %932 = vmatpush.xpose.msra.mxu0 0.0
    %933 = vmatpush.xpose.msra.mxu0 %v902
    %934 = vmatpush.xpose.msra.mxu0 %v900
    %935 = vmatpush.xpose.msra.mxu0 %v897
    %936 = vmatpush.xpose.msra.mxu0 %v895
    %937 = vmatmul.f32.gmra.mxu0 %v920
    %v938 = vpop.f32.mrf.mxu0
    %v939 = vadd.f32 0.0, %v938
    %940 = vdwg.mxu0
    %v941 = vperm.slane %v939, 0
    %v942 = vadd.f32 %v913, %v941
    %v943 = vadd.f32 %v915, %v941
    %v944 = vadd.f32 %v917, %v941
    %v945 = vadd.f32 %v919, %v941
    %v946 = vmul.f32 %v942, 0.2
    %v947 = vmul.f32 %v943, 0.2
    %v948 = vmul.f32 %v944, 0.2
    %v949 = vmul.f32 %v945, 0.2
    %v950 = vmax.f32 %v942, %v946
    %v951 = vmax.f32 %v943, %v947
    %v952 = vmax.f32 %v944, %v948
    %v953 = vmax.f32 %v945, %v949
    %v954 = vadd.f32 %v950, %v148
    %v955 = vadd.f32 %v951, %v149
    %v956 = vadd.f32 %v952, %v150
    %v957 = vadd.f32 %v953, %v151
    %v958 = vsel %vm381, %v954, -inf
    %959 = vmax.xlane.f32.xlu0 %v958
    %v960 = vpop.xlane.xlu0 %959
    %v961 = vsel %vm381, %v955, -inf
    %962 = vmax.xlane.f32.xlu0 %v961
    %v963 = vpop.xlane.xlu0 %962
    %v964 = vsel %vm381, %v956, -inf
    %965 = vmax.xlane.f32.xlu0 %v964
    %v966 = vpop.xlane.xlu0 %965
    %v967 = vsel %vm381, %v957, -inf
    %968 = vmax.xlane.f32.xlu0 %v967
    %v969 = vpop.xlane.xlu0 %968
    %v970 = vsub.f32 %v954, %v960
    %v971 = vsub.f32 %v955, %v963
    %v972 = vsub.f32 %v956, %v966
    %v973 = vsub.f32 %v957, %v969
    %v974 = vmul.f32 %v970, 1.442695
    %v975 = vpow.pop %v974
    %v976 = vmul.f32 %v971, 1.442695
    %v977 = vpow.pop %v976
    %v978 = vmul.f32 %v972, 1.442695
    %v979 = vpow.pop %v978
    %v980 = vmul.f32 %v973, 1.442695
    %v981 = vpow.pop %v980
    %v982 = vsel %vm381, %v975, 0.0
    %983 = vadd.xlane.f32.xlu0 %v982
    %v984 = vpop.xlane.xlu0 %983
    %v985 = vsel %vm381, %v977, 0.0
    %986 = vadd.xlane.f32.xlu0 %v985
    %v987 = vpop.xlane.xlu0 %986
    %v988 = vsel %vm381, %v979, 0.0
    %989 = vadd.xlane.f32.xlu0 %v988
    %v990 = vpop.xlane.xlu0 %989
    %v991 = vsel %vm381, %v981, 0.0
    %992 = vadd.xlane.f32.xlu0 %v991
    %v993 = vpop.xlane.xlu0 %992
    %v994 = vmax.f32 %v984, 1e-20
    %v995 = vmax.f32 %v987, 1e-20
    %v996 = vmax.f32 %v990, 1e-20
    %v997 = vmax.f32 %v993, 1e-20
    %v998 = vpack.c.bf16 %v977, %v975
    %v999 = vpack.c.bf16 %v981, %v979
    %v1000 = vpack.c.bf16 %v897, %v895
    %v1001 = vpack.c.bf16 %v902, %v900
    %v1003 = vsel %vm381, %v998, 0
    %v1006 = vsel %vm381, %v999, 0
    %1008 = vmatpush.bf16.msra.mxu0 0
    %1009 = vmatpush.bf16.msra.mxu0 0
    %1010 = vmatpush.bf16.msra.mxu0 0
    %1011 = vmatpush.bf16.msra.mxu0 0
    %1012 = vmatpush.bf16.msra.mxu0 0
    %1013 = vmatpush.bf16.msra.mxu0 0
    %1014 = vmatpush.bf16.msra.mxu0 %v1001
    %1015 = vmatpush.bf16.msra.mxu0 %v1000
    %1016 = vmatmul.bf16.gmra.mxu0 %v1003
    %v1017 = vpop.f32.mrf.mxu0
    %v1018 = vadd.f32 0.0, %v1017
    %v1019 = vpop.f32.mrf.mxu0
    %v1020 = vadd.f32 0.0, %v1019
    %1021 = vmatmul.bf16.gmra.mxu0 %v1006
    %v1022 = vpop.f32.mrf.mxu0
    %v1023 = vadd.f32 0.0, %v1022
    %v1024 = vpop.f32.mrf.mxu0
    %v1025 = vadd.f32 0.0, %v1024
    %1026 = vdwg.mxu0
    %v1027 = vrcp.pop %v994
    %v1028 = vrcp.pop %v995
    %v1029 = vrcp.pop %v996
    %v1030 = vrcp.pop %v997
    %v1031 = vmul.f32 %v1018, %v1027
    %v1032 = vmul.f32 %v1020, %v1028
    %v1033 = vmul.f32 %v1023, %v1029
    %v1034 = vmul.f32 %v1025, %v1030
    %v1035 = vld [vmem:[%s13] sm:$0x1]
    %v1037 = vperm.slane %v1035, 0
    %v1039 = vadd.f32 %v1031, %v1037
    %v1040 = vadd.f32 %v1032, %v1037
    %v1041 = vadd.f32 %v1033, %v1037
    %v1042 = vadd.f32 %v1034, %v1037
    %v1043 = vxor.u32 %v1039, 2147483648
    %v1044 = vxor.u32 %v1040, 2147483648
    %v1045 = vxor.u32 %v1041, 2147483648
    %v1046 = vxor.u32 %v1042, 2147483648
    %v1047 = vmul.f32 %v1043, 1.442695
    %v1048 = vpow.pop %v1047
    %v1049 = vmul.f32 %v1044, 1.442695
    %v1050 = vpow.pop %v1049
    %v1051 = vmul.f32 %v1045, 1.442695
    %v1052 = vpow.pop %v1051
    %v1053 = vmul.f32 %v1046, 1.442695
    %v1054 = vpow.pop %v1053
    %v1055 = vadd.f32 %v1048, 1.0
    %v1056 = vadd.f32 %v1050, 1.0
    %v1057 = vadd.f32 %v1052, 1.0
    %v1058 = vadd.f32 %v1054, 1.0
    %v1059 = vrcp.pop %v1055
    %v1060 = vmul.f32 %v1055, %v1059
    %v1061 = vsub.f32 1.0, %v1060
    %v1062 = vmul.f32 %v1059, %v1061
    %v1063 = vadd.f32 %v1059, %v1062
    %vm1064 = vweird.f32 %v1055
    %vm1065 = vweird.f32 %v1059
    %vm1066 = vmor %vm1064, %vm1065
    %v1067 = vsel %vm1066, %v1059, %v1063
    %v1068 = vand.u32 2147483647, %v1055
    %vm1069 = vcmp.eq.f32.partialorder %v1068, 8.507059e+37
    %v1070 = vand.u32 %v1055, 2147483648
    %v1071 = vor.u32 1.1754944e-38, %v1070
    %v1072 = vsel %vm1069, %v1071, %v1067
    %v1073 = vmul.f32 1.0, %v1072
    %v1074 = vrcp.pop %v1056
    %v1075 = vmul.f32 %v1056, %v1074
    %v1076 = vsub.f32 1.0, %v1075
    %v1077 = vmul.f32 %v1074, %v1076
    %v1078 = vadd.f32 %v1074, %v1077
    %vm1079 = vweird.f32 %v1056
    %vm1080 = vweird.f32 %v1074
    %vm1081 = vmor %vm1079, %vm1080
    %v1082 = vsel %vm1081, %v1074, %v1078
    %v1083 = vand.u32 2147483647, %v1056
    %vm1084 = vcmp.eq.f32.partialorder %v1083, 8.507059e+37
    %v1085 = vand.u32 %v1056, 2147483648
    %v1086 = vor.u32 1.1754944e-38, %v1085
    %v1087 = vsel %vm1084, %v1086, %v1082
    %v1088 = vmul.f32 1.0, %v1087
    %v1089 = vrcp.pop %v1057
    %v1090 = vmul.f32 %v1057, %v1089
    %v1091 = vsub.f32 1.0, %v1090
    %v1092 = vmul.f32 %v1089, %v1091
    %v1093 = vadd.f32 %v1089, %v1092
    %vm1094 = vweird.f32 %v1057
    %vm1095 = vweird.f32 %v1089
    %vm1096 = vmor %vm1094, %vm1095
    %v1097 = vsel %vm1096, %v1089, %v1093
    %v1098 = vand.u32 2147483647, %v1057
    %vm1099 = vcmp.eq.f32.partialorder %v1098, 8.507059e+37
    %v1100 = vand.u32 %v1057, 2147483648
    %v1101 = vor.u32 1.1754944e-38, %v1100
    %v1102 = vsel %vm1099, %v1101, %v1097
    %v1103 = vmul.f32 1.0, %v1102
    %v1104 = vrcp.pop %v1058
    %v1105 = vmul.f32 %v1058, %v1104
    %v1106 = vsub.f32 1.0, %v1105
    %v1107 = vmul.f32 %v1104, %v1106
    %v1108 = vadd.f32 %v1104, %v1107
    %vm1109 = vweird.f32 %v1058
    %vm1110 = vweird.f32 %v1104
    %vm1111 = vmor %vm1109, %vm1110
    %v1112 = vsel %vm1111, %v1104, %v1108
    %v1113 = vand.u32 2147483647, %v1058
    %vm1114 = vcmp.eq.f32.partialorder %v1113, 8.507059e+37
    %v1115 = vand.u32 %v1058, 2147483648
    %v1116 = vor.u32 1.1754944e-38, %v1115
    %v1117 = vsel %vm1114, %v1116, %v1112
    %v1118 = vmul.f32 1.0, %v1117
    %1119 = vst [vmem:[#allocation13] sm:$0xff] %v1073
    %1120 = vst [vmem:[#allocation13 + $0x8] sm:$0xff] %v1088
    %1121 = vst [vmem:[#allocation13 + $0x10] sm:$0xff] %v1103
    %1122 = vst [vmem:[#allocation13 + $0x18] sm:$0xff] %v1118
    // Predicated region
    $region82: #{tpu_custom_call.1} parent=1 // pred_check
      _
    $region83: #{tpu_custom_call.1} parent=1 // pred_check_branch
      %1124 = sbr.rel (0) target = $region85
    $region84: #{tpu_custom_call.1} parent=1 // pred_region
      %1126 = vsyncadd [#allocation4], 0
      %s1127 = sshll.u32 [#allocation13], 4
      %s1128 = int_to_ptr.vmem [resolvable:$true] %s1127
      %s1129 = sshll.u32 %s14, 4
      %s1130 = int_to_ptr.hbm [resolvable:$true] %s1129
      %1135 = dma.vmem_to_hbm [thread:$0]  %s1128, 512, %s1130, [#allocation4], 128, 128, 8
    $region85: #{tpu_custom_call.1} parent=1 // pred_fallthru
      _
    // Predicated region
    $region86: #{tpu_custom_call.1} parent=1 // pred_check
      _
    $region87: #{tpu_custom_call.1} parent=1 // pred_check_branch
      %1137 = sbr.rel (0) target = $region89
    $region88: #{tpu_custom_call.1} parent=1 // pred_region
      %1139 = dma.done [#allocation4], 512
    $region89: #{tpu_custom_call.1} parent=1 // pred_fallthru
      _
    %1140 = vsyncpa [#allocation3], 1
    %1141 = vsyncpa [#allocation6], 1
    %1142 = vsyncpa [#allocation9], 1
    %1143 = vsyncpa [#allocation12], 1
    %1144 = vsyncpa [#allocation4], 1

</llo_original>
